<compile_context>
chip_gen: v5e
topology: v5e:2x2
jax: 0.10.0
libtpu: 0.0.40
codegen_flags: <defaults>
</compile_context>

<pallas_src>
import jax
import jax.numpy as jnp
from jax.experimental import pallas as pl
from jax.experimental.pallas import tpu as pltpu


def linear_kernel(x_ref, w_ref, o_ref):
    # x:      (B, in)
    # w_ref:  (in + 1, out)  — rows [0:in) are the canonical [K, N] weight,
    #                          row [in] is the bias (folded in at param-load time).
    in_size = x_ref.shape[1]
    x = x_ref[...]
    w = w_ref[:in_size, :]          # (in, out) — static view, zero-cost slice
    b = w_ref[in_size:, :]          # (1, out)  — row-broadcast add on the VPU
    acc = jnp.dot(x, w, preferred_element_type=jnp.float32)
    o_ref[...] = (acc + b).astype(o_ref.dtype)


def pack_linear_params(weight, bias):
    """One-time, at parameter-load time (NOT per forward call).

    Takes PyTorch-native nn.Linear params:
        weight: (out_size, in_size)
        bias:   (out_size,)
    Returns a single (in_size + 1, out_size) buffer: the weight transposed into the
    MXU-canonical [K, N] orientation with the bias appended as the final row.
    """
    return jnp.concatenate([weight.T, bias[None, :]], axis=0)


def mock_model_forward(x, w_aug):
    """y = x @ W.T + b  (PyTorch nn.Linear semantics), with W/b pre-packed into w_aug.

    x:     (B, input_size) float32
    w_aug: (input_size + 1, output_size) float32   (from pack_linear_params)
    returns (B, output_size) float32
    """
    B, in_size = x.shape
    out_size = w_aug.shape[1]

    vmem_spec = pl.BlockSpec(memory_space=pltpu.MemorySpace.VMEM)

    cost = pl.CostEstimate(
        flops=2 * B * in_size * out_size,
        transcendentals=0,
        bytes_accessed=4 * (B * in_size + (in_size + 1) * out_size + B * out_size),
    )

    return pl.pallas_call(
        linear_kernel,
        out_shape=jax.ShapeDtypeStruct((B, out_size), x.dtype),
        in_specs=[vmem_spec, vmem_spec],
        out_specs=vmem_spec,
        cost_estimate=cost,
    )(x, w_aug)


if __name__ == "__main__":
    input_size = 10
    output_size = 2
    batch = 8

    key = jax.random.PRNGKey(0)
    k_x, k_w, k_b = jax.random.split(key, 3)

    # Deterministic parameter init mimicking nn.Linear's uniform(-1/sqrt(in), 1/sqrt(in)).
    bound = 1.0 / (input_size ** 0.5)
    weight = jax.random.uniform(
        k_w, (output_size, input_size), jnp.float32, minval=-bound, maxval=bound
    )
    bias = jax.random.uniform(
        k_b, (output_size,), jnp.float32, minval=-bound, maxval=bound
    )
    x = jax.random.normal(k_x, (batch, input_size), jnp.float32)

    # One-time parameter packing (canonical [K,N] layout + bias folded in).
    w_aug = jax.block_until_ready(pack_linear_params(weight, bias))

    y = mock_model_forward(x, w_aug)
    y = jax.block_until_ready(y)

    # Correctness check against plain-JAX reference of nn.Linear.
    y_ref = x @ weight.T + bias
    assert y.shape == (batch, output_size)
    assert jnp.allclose(y, y_ref, atol=1e-5, rtol=1e-5)

    print("KERNEL_OK")
</pallas_src>

<mosaic_0001>
module attributes {stable_mosaic.version = 11 : i64} {
  func.func @linear_kernel(%arg0: memref<8x10xf32, #tpu.memory_space<vmem>>, %arg1: memref<11x2xf32, #tpu.memory_space<vmem>>, %arg2: memref<8x2xf32, #tpu.memory_space<vmem>>) attributes {dimension_semantics = [], scalar_prefetch = 0 : i64, scratch_operands = 0 : i64, tpu.core_type = #tpu.core_type<tc>} {
    %c0 = arith.constant 0 : index
    %c0_0 = arith.constant 0 : index
    %0 = vector.load %arg0[%c0, %c0_0] : memref<8x10xf32, #tpu.memory_space<vmem>>, vector<8x10xf32>
    %c0_1 = arith.constant 0 : index
    %c0_2 = arith.constant 0 : index
    %1 = vector.load %arg1[%c0_1, %c0_2] : memref<11x2xf32, #tpu.memory_space<vmem>>, vector<10x2xf32>
    %c10 = arith.constant 10 : index
    %c0_3 = arith.constant 0 : index
    %2 = vector.load %arg1[%c10, %c0_3] : memref<11x2xf32, #tpu.memory_space<vmem>>, vector<1x2xf32>
    %cst = arith.constant dense<0.000000e+00> : vector<8x2xf32>
    %3 = tpu.matmul %0, %1, %cst {dimension_numbers = #tpu.dot_dimension_numbers<[1], [0], [0], [1], [0, 0, 1, 1], [], []>} : vector<8x10xf32>, vector<10x2xf32>, vector<8x2xf32> -> vector<8x2xf32>
    %4 = vector.broadcast %2 : vector<1x2xf32> to vector<8x2xf32>
    %5 = arith.addf %3, %4 : vector<8x2xf32>
    %c0_4 = arith.constant 0 : index
    %c0_5 = arith.constant 0 : index
    %6 = vector.load %arg2[%c0_4, %c0_5] : memref<8x2xf32, #tpu.memory_space<vmem>>, vector<8x2xf32>
    tpu.vector_store %arg2[%c0_4, %c0_5], %5 {strides = array<i32>} : memref<8x2xf32, #tpu.memory_space<vmem>>, vector<8x2xf32>,
    return
  }
}

</mosaic_0001>

<llo_original>
// kernel: tpu_custom_call.1
$region0: #{tpu_custom_call.1}
  #allocation0 [shape = 'u32[]', space=smem, size = 0x4, offset = 0x4, fixed_abs, tag = 'smem constant byte address 0x4 - core index']
  #allocation1 [shape = 'u32[72,128]{1,0:T(1,128)}', space=vmem, size = 0x9000, scoped, tag = 'internal scratch']
  %s0 = inlined_call_operand.vmem [shape: f32[8,10], index: 0, kind: input, shape index: {}]
  %s1 = inlined_call_operand.vmem [shape: f32[11,2], index: 1, kind: input, shape index: {}]
  %s2 = inlined_call_operand.vmem [shape: f32[8,2], index: 2, kind: output, shape index: {}]
  %s3 = sld [smem:[#allocation0]]
  $region18: #{tpu_custom_call.1} parent=0
    _
  %s5 = ssub.s32 1, %s3
  %s6 = scalar_select 0, %s5, %s3
  // Predicated region
  $region2: #{tpu_custom_call.1} parent=0 // pred_check
    _
  $region3: #{tpu_custom_call.1} parent=0 // pred_check_branch
    %8 = sbr.rel (0) target = $region5
  $region4: #{tpu_custom_call.1} parent=0 // pred_region
    _
  $region5: #{tpu_custom_call.1} parent=0 // pred_fallthru
    _
  // Predicated region
  $region6: #{tpu_custom_call.1} parent=0 // pred_check
    _
  $region7: #{tpu_custom_call.1} parent=0 // pred_check_branch
    %10 = sbr.rel (0) target = $region9
  $region8: #{tpu_custom_call.1} parent=0 // pred_region
    _
  $region9: #{tpu_custom_call.1} parent=0 // pred_fallthru
    _
  %v11 = vld [vmem:[%s0] sm:$0xff]
  %v12 = vld [vmem:[%s1] sm:$0xff]
  %v13 = vld [vmem:[%s1 + $0x8] sm:$0x3]
  %v14 = vld [vmem:[%s1 + $0xa] sm:$0x1]
  %v15 = vperm.slane %v14, 0
  %vm16 = vcmask 80896
  %v18 = vsel %vm16, %v11, 0
  %vm20 = vcmask 1041408
  %v22 = vsel %vm20, %v13, 0
  %24 = vmatpush.msra.mxu0 0.0
  %25 = vmatpush.msra.mxu0 0.0
  %26 = vmatpush.msra.mxu0 0.0
  %27 = vmatpush.msra.mxu0 0.0
  %28 = vmatpush.msra.mxu0 0.0
  %29 = vmatpush.msra.mxu0 0.0
  %30 = vmatpush.msra.mxu0 0.0
  %31 = vmatpush.msra.mxu0 0.0
  %32 = vmatpush.msra.mxu0 0.0
  %33 = vmatpush.msra.mxu0 0.0
  %34 = vmatpush.msra.mxu0 0.0
  %35 = vmatpush.msra.mxu0 0.0
  %36 = vmatpush.msra.mxu0 0.0
  %37 = vmatpush.msra.mxu0 0.0
  %38 = vmatpush.msra.mxu0 %v22
  %39 = vmatpush.msra.mxu0 %v12
  %40 = vmatmul.f32.gmra.mxu0 %v18
  %v41 = vpop.f32.mrf.mxu0
  %v42 = vadd.f32 %v15, %v41
  %43 = vdwg.mxu0
  %vm44 = vcmask 15360
  %45 = vst.msk [vmem:[%s2] sm:$0xff] %vm44, %v42
  // Predicated region
  $region10: #{tpu_custom_call.1} parent=0 // pred_check
    _
  $region11: #{tpu_custom_call.1} parent=0 // pred_check_branch
    %47 = sbr.rel (0) target = $region13
  $region12: #{tpu_custom_call.1} parent=0 // pred_region
    _
  $region13: #{tpu_custom_call.1} parent=0 // pred_fallthru
    _
  // Predicated region
  $region14: #{tpu_custom_call.1} parent=0 // pred_check
    _
  $region15: #{tpu_custom_call.1} parent=0 // pred_check_branch
    %49 = sbr.rel (0) target = $region17
  $region16: #{tpu_custom_call.1} parent=0 // pred_region
    _
  $region17: #{tpu_custom_call.1} parent=0 // pred_fallthru
    _

</llo_original>
